<compile_context>
chip_gen: v7x
topology: tpu7x:2x2x1
jax: 0.10.0
libtpu: 0.0.40
codegen_flags: <defaults>
</compile_context>

<pallas_src>
import functools

import jax
import jax.numpy as jnp
from jax import lax
from jax.experimental import pallas as pl
from jax.experimental.pallas import tpu as pltpu


# ----------------------------- kernels --------------------------------------


def _gn_fused_kernel(x_ref, w_ref, b_ref, o_ref, *, eps, inv_count, pad_per_group):
    # x_ref: (MB, R, Lp); w_ref/b_ref: (MB, R, 1).  One grid step normalizes
    # MB independent group instances.  Fresh x_ref reads per pass keep the
    # f32 upcast streaming instead of pinning a full-block f32 temporary.
    s1 = jnp.sum(x_ref[...].astype(jnp.float32), axis=2, keepdims=True)   # (MB,R,1)
    mean = jnp.sum(s1, axis=1, keepdims=True) * inv_count                 # (MB,1,1)

    # Two-pass variance (numerically matches PyTorch when |mean| >> std,
    # unlike E[x^2]-mean^2).  Zero-padded lanes each contribute mean^2 to the
    # squared-deviation sum; subtract the statically known excess.
    d = x_ref[...].astype(jnp.float32) - mean
    s2 = jnp.sum(jnp.sum(d * d, axis=2, keepdims=True), axis=1, keepdims=True)
    if pad_per_group:
        s2 = s2 - pad_per_group * (mean * mean)
    # max(var, 0) guards rounding-induced tiny negatives; differs from
    # torch's plain `var + eps` only when var underflows negative (negligible).
    var = jnp.maximum(s2 * inv_count, 0.0)
    inv_std = lax.rsqrt(var + eps)

    # Fold affine into per-row scale/shift -> single FMA pass over the block.
    scale = w_ref[...].astype(jnp.float32) * inv_std                      # (MB,R,1)
    shift = b_ref[...].astype(jnp.float32) - mean * scale
    o_ref[...] = (x_ref[...].astype(jnp.float32) * scale + shift).astype(o_ref.dtype)


def _gn_stats_kernel(x_ref, w_ref, b_ref, scale_ref, shift_ref, s1_ref, s2_ref,
                     *, eps, inv_count):
    # Tiled (large-group) path, pass 1: accumulate per-group sums over lane
    # tiles and emit per-row scale/shift on the last tile.
    t = pl.program_id(1)

    @pl.when(t == 0)
    def _init():
        s1_ref[...] = jnp.zeros_like(s1_ref)
        s2_ref[...] = jnp.zeros_like(s2_ref)

    x = x_ref[...].astype(jnp.float32)                                    # (1,R,Lt)
    s1_ref[...] += jnp.sum(jnp.sum(x, axis=2, keepdims=True), axis=1, keepdims=True)
    s2_ref[...] += jnp.sum(jnp.sum(x * x, axis=2, keepdims=True), axis=1, keepdims=True)

    @pl.when(t == pl.num_programs(1) - 1)
    def _finalize():
        mean = s1_ref[...] * inv_count                                    # (1,1,1)
        # TODO(synk): one-pass E[x^2]-mean^2 for the out-of-VMEM path; a true
        # two-pass stats sweep would match PyTorch even closer when
        # |mean| >> std over very large groups.
        var = jnp.maximum(s2_ref[...] * inv_count - mean * mean, 0.0)
        inv_std = lax.rsqrt(var + eps)
        scale = w_ref[...].astype(jnp.float32) * inv_std                  # (1,R,1)
        scale_ref[...] = scale
        shift_ref[...] = b_ref[...].astype(jnp.float32) - mean * scale


def _gn_apply_kernel(x_ref, scale_ref, shift_ref, o_ref):
    # Tiled path, pass 2: pure per-row FMA, lane-dense stores.
    o_ref[...] = (x_ref[...].astype(jnp.float32) * scale_ref[...]
                  + shift_ref[...]).astype(o_ref.dtype)


# ----------------------------- host-side helpers ----------------------------


def _vmem_budget():
    """Usable per-core VMEM bytes (capacity minus ~8 MiB headroom)."""
    try:
        cap = int(pltpu.get_tpu_info().vmem_capacity_bytes)
    except Exception:
        cap = 64 * 1024 * 1024          # conservative: v7x per-TC VMEM
    return max(cap - (8 << 20), 16 << 20)


def _choose_refold(cg, hw, itemsize):
    """Return (S, Lp, pad): refold each (Cg, HW) group slab to (Cg*S, Lp) with
    Lp a multiple of 128 (lane-dense).  Prefer filling sublanes
    (Cg*S >= 8/16/32 for 4/2/1-byte dtypes); if HW has no suitable
    factorization, keep S=1 and zero-pad the lane axis instead of emitting a
    non-128-multiple last dim (which would force masked stores)."""
    min_sub = {1: 32, 2: 16, 4: 8}.get(itemsize, 8)
    s_cap = max(1, -(-min_sub // cg))
    cands = [s for s in range(1, min(hw, s_cap) + 1)
             if hw % s == 0 and (hw // s) % 128 == 0]
    for s in cands:
        if cg * s >= min_sub:
            return s, hw // s, 0
    if cands:
        s = cands[-1]
        return s, hw // s, 0
    lp = -(-hw // 128) * 128
    return 1, lp, lp - hw


def _choose_fuse(m, group_bytes, target):
    """Group instances per fused block: largest divisor of m under the byte
    target, keeping >= 2 (preferably even) grid steps once the total work is
    big enough for megacore sharding to matter."""
    divs = [d for d in range(1, m + 1) if m % d == 0 and d * group_bytes <= target]
    if not divs:
        return 1
    best = divs[-1]
    if m * group_bytes > (1 << 20):
        if best == m and len(divs) >= 2:
            best = divs[-2]                         # keep >= 2 grid steps
        if (m // best) % 2 == 1:
            even = [d for d in divs if (m // d) % 2 == 0 and 2 * d >= best]
            if even:
                best = even[-1]                     # even step count (v7x 2 TCs)
    return best


def _vmem_limit(usable, block_bytes):
    return int(min(usable, max(32 << 20, 8 * block_bytes + (4 << 20))))


# ----------------------------- public wrapper -------------------------------


def group_norm_pallas(x, weight, bias, num_groups, eps=1e-5, *,
                      block_bytes_target=None):
    """GroupNorm forward matching torch.nn.functional.group_norm (NCHW)."""
    N, C, H, W = x.shape
    G = int(num_groups)
    assert C % G == 0, "num_channels must be divisible by num_groups"
    Cg = C // G
    HW = H * W
    M = N * G
    itemsize = jnp.dtype(x.dtype).itemsize

    # Lazy/affine handling: materialized params are ones/zeros of shape (C,).
    if weight is None:
        weight = jnp.ones((C,), x.dtype)
    if bias is None:
        bias = jnp.zeros((C,), x.dtype)

    S, Lp, pad = _choose_refold(Cg, HW, itemsize)
    R = Cg * S
    Lv = HW // S                          # valid lanes (== Lp unless padded)

    usable = _vmem_budget()
    target = block_bytes_target
    if target is None:
        # ~7 MiB on v7x (64 MiB VMEM), ~15 MiB on v5e/v6e (128 MiB VMEM).
        target = max(1 << 20, min(16 << 20, usable // 8))

    # Wrapper-side layout plumbing (done once, not per grid step).
    xg = x.reshape(M, R, Lv)
    if pad:
        xg = jnp.pad(xg, ((0, 0), (0, 0), (0, pad)))
    w_rows = jnp.repeat(weight.reshape(G, Cg), S, axis=1)                 # (G, R)
    b_rows = jnp.repeat(bias.reshape(G, Cg), S, axis=1)
    wg = jnp.broadcast_to(w_rows[None], (N, G, R)).reshape(M, R, 1)
    bg = jnp.broadcast_to(b_rows[None], (N, G, R)).reshape(M, R, 1)

    inv_count = 1.0 / float(Cg * HW)
    group_bytes = R * Lp * itemsize
    total = N * C * HW

    if group_bytes <= target:
        # ------------------------ fused path ---------------------------------
        MB = _choose_fuse(M, group_bytes, target)
        block_bytes = MB * group_bytes
        kernel = functools.partial(
            _gn_fused_kernel, eps=float(eps), inv_count=inv_count,
            pad_per_group=float(R * pad))
        out = pl.pallas_call(
            kernel,
            out_shape=jax.ShapeDtypeStruct((M, R, Lp), x.dtype),
            grid_spec=pltpu.PrefetchScalarGridSpec(
                num_scalar_prefetch=0,
                grid=(M // MB,),
                in_specs=[
                    pl.BlockSpec((MB, R, Lp), lambda i: (i, 0, 0)),
                    pl.BlockSpec((MB, R, 1), lambda i: (i, 0, 0)),
                    pl.BlockSpec((MB, R, 1), lambda i: (i, 0, 0)),
                ],
                out_specs=pl.BlockSpec((MB, R, Lp), lambda i: (i, 0, 0)),
            ),
            compiler_params=pltpu.CompilerParams(
                dimension_semantics=("parallel",),
                vmem_limit_bytes=_vmem_limit(usable, block_bytes)),
            cost_estimate=pl.CostEstimate(
                flops=8 * total, transcendentals=M,
                bytes_accessed=2 * total * itemsize),
        )(xg, wg, bg)
    else:
        # ---------- tiled path: one group instance exceeds the budget --------
        # Lane-tile size: largest multiple-of-128 divisor of Lp under target.
        k = Lp // 128
        Lt = 128
        for d in range(1, k + 1):
            if k % d == 0 and R * (128 * d) * itemsize <= target:
                Lt = 128 * d
        nt = Lp // Lt
        block_bytes = R * Lt * itemsize
        vmem_limit = _vmem_limit(usable, block_bytes)

        stats_kernel = functools.partial(
            _gn_stats_kernel, eps=float(eps), inv_count=inv_count)
        scale, shift = pl.pallas_call(
            stats_kernel,
            out_shape=(jax.ShapeDtypeStruct((M, R, 1), jnp.float32),
                       jax.ShapeDtypeStruct((M, R, 1), jnp.float32)),
            grid_spec=pltpu.PrefetchScalarGridSpec(
                num_scalar_prefetch=0,
                grid=(M, nt),
                in_specs=[
                    pl.BlockSpec((1, R, Lt), lambda m, t: (m, 0, t)),
                    pl.BlockSpec((1, R, 1), lambda m, t: (m, 0, 0)),
                    pl.BlockSpec((1, R, 1), lambda m, t: (m, 0, 0)),
                ],
                out_specs=[
                    pl.BlockSpec((1, R, 1), lambda m, t: (m, 0, 0)),
                    pl.BlockSpec((1, R, 1), lambda m, t: (m, 0, 0)),
                ],
                scratch_shapes=[pltpu.VMEM((1, 1, 1), jnp.float32),
                                pltpu.VMEM((1, 1, 1), jnp.float32)],
            ),
            compiler_params=pltpu.CompilerParams(
                dimension_semantics=("parallel", "arbitrary"),
                vmem_limit_bytes=vmem_limit),
            cost_estimate=pl.CostEstimate(
                flops=4 * total, transcendentals=M,
                bytes_accessed=total * itemsize),
        )(xg, wg, bg)

        out = pl.pallas_call(
            _gn_apply_kernel,
            out_shape=jax.ShapeDtypeStruct((M, R, Lp), x.dtype),
            grid_spec=pltpu.PrefetchScalarGridSpec(
                num_scalar_prefetch=0,
                grid=(M, nt),
                in_specs=[
                    pl.BlockSpec((1, R, Lt), lambda m, t: (m, 0, t)),
                    pl.BlockSpec((1, R, 1), lambda m, t: (m, 0, 0)),
                    pl.BlockSpec((1, R, 1), lambda m, t: (m, 0, 0)),
                ],
                out_specs=pl.BlockSpec((1, R, Lt), lambda m, t: (m, 0, t)),
            ),
            compiler_params=pltpu.CompilerParams(
                dimension_semantics=("parallel", "parallel"),
                vmem_limit_bytes=vmem_limit),
            cost_estimate=pl.CostEstimate(
                flops=2 * total, transcendentals=0,
                bytes_accessed=2 * total * itemsize),
        )(xg, scale, shift)

    if pad:
        out = out[:, :, :Lv]
    return out.reshape(N, C, H, W)


def group_norm_ref(x, weight, bias, num_groups, eps=1e-5):
    """Plain-JAX reference implementation of F.group_norm."""
    N, C, H, W = x.shape
    xg = x.reshape(N, num_groups, -1).astype(jnp.float32)
    mean = jnp.mean(xg, axis=-1, keepdims=True)
    var = jnp.mean((xg - mean) ** 2, axis=-1, keepdims=True)
    y = (xg - mean) / jnp.sqrt(var + eps)
    y = y.reshape(N, C, H, W)
    y = y * weight.reshape(1, C, 1, 1) + bias.reshape(1, C, 1, 1)
    return y.astype(x.dtype)


if __name__ == "__main__":
    key = jax.random.PRNGKey(0)
    eps = 1e-5
    kx, kw, kb = jax.random.split(key, 3)

    # --- LazyGroupNorm defaults: params materialized to ones/zeros ----------
    N, C, H, W, G = 2, 4, 16, 16, 2
    x = jax.random.normal(kx, (N, C, H, W), dtype=jnp.float32)
    weight = jnp.ones((C,), jnp.float32)       # reset_parameters(): ones
    bias = jnp.zeros((C,), jnp.float32)        # reset_parameters(): zeros
    out = jax.block_until_ready(group_norm_pallas(x, weight, bias, G, eps))
    ref = group_norm_ref(x, weight, bias, G, eps)
    assert out.shape == x.shape and out.dtype == x.dtype
    assert jnp.allclose(out, ref, atol=2e-5, rtol=2e-5), "fused path mismatch"

    # --- non-trivial affine + zero-padded lane fallback (HW not /128) -------
    x2 = jax.random.normal(kx, (2, 4, 10, 10), dtype=jnp.float32)
    w2 = jax.random.normal(kw, (4,), dtype=jnp.float32)
    b2 = jax.random.normal(kb, (4,), dtype=jnp.float32)
    out2 = jax.block_until_ready(group_norm_pallas(x2, w2, b2, 2, eps))
    assert jnp.allclose(out2, group_norm_ref(x2, w2, b2, 2, eps),
                        atol=2e-5, rtol=2e-5), "padded path mismatch"

    # --- exercise the spatially-tiled (large-group) path on a small shape ---
    x3 = jax.random.normal(kx, (1, 8, 32, 32), dtype=jnp.float32)
    w3 = jax.random.normal(kw, (8,), dtype=jnp.float32)
    b3 = jax.random.normal(kb, (8,), dtype=jnp.float32)
    out3 = jax.block_until_ready(
        group_norm_pallas(x3, w3, b3, 2, eps, block_bytes_target=8192))
    assert jnp.allclose(out3, group_norm_ref(x3, w3, b3, 2, eps),
                        atol=2e-5, rtol=2e-5), "tiled path mismatch"

    print("KERNEL_OK")
</pallas_src>

<mosaic_0001>
module attributes {stable_mosaic.version = 11 : i64} {
  func.func @_gn_fused_kernel(%arg0: i32, %arg1: memref<4x4x128xf32, #tpu.memory_space<vmem>>, %arg2: memref<4x4x1xf32, #tpu.memory_space<vmem>>, %arg3: memref<4x4x1xf32, #tpu.memory_space<vmem>>, %arg4: memref<4x4x128xf32, #tpu.memory_space<vmem>>) attributes {dimension_semantics = [#tpu.dimension_semantics<parallel>], iteration_bounds = array<i64: 1>, scalar_prefetch = 0 : i64, scratch_operands = 0 : i64, tpu.core_type = #tpu.core_type<tc>, window_params = [{transform_indices = @transform_0, window_bounds = array<i64: 4, 4, 128>}, {transform_indices = @transform_1, window_bounds = array<i64: 4, 4, 1>}, {transform_indices = @transform_2, window_bounds = array<i64: 4, 4, 1>}, {transform_indices = @transform_3, window_bounds = array<i64: 4, 4, 128>}]} {
    %c0 = arith.constant 0 : index
    %c0_0 = arith.constant 0 : index
    %c0_1 = arith.constant 0 : index
    %0 = vector.load %arg1[%c0, %c0_0, %c0_1] : memref<4x4x128xf32, #tpu.memory_space<vmem>>, vector<4x4x128xf32>
    %cst = arith.constant dense<0.000000e+00> : vector<4x4xf32>
    %1 = vector.multi_reduction <add>, %0, %cst [2] : vector<4x4x128xf32> to vector<4x4xf32>
    %2 = vector.shape_cast %1 : vector<4x4xf32> to vector<4x4x1xf32>
    %cst_2 = arith.constant dense<0.000000e+00> : vector<4x1xf32>
    %3 = vector.multi_reduction <add>, %2, %cst_2 [1] : vector<4x4x1xf32> to vector<4x1xf32>
    %4 = vector.shape_cast %3 : vector<4x1xf32> to vector<4x1x1xf32>
    %cst_3 = arith.constant 0.001953125 : f32
    %5 = vector.broadcast %cst_3 : f32 to vector<4x1x1xf32>
    %6 = arith.mulf %4, %5 : vector<4x1x1xf32>
    %c0_4 = arith.constant 0 : index
    %c0_5 = arith.constant 0 : index
    %c0_6 = arith.constant 0 : index
    %7 = vector.load %arg1[%c0_4, %c0_5, %c0_6] : memref<4x4x128xf32, #tpu.memory_space<vmem>>, vector<4x4x128xf32>
    %8 = vector.broadcast %6 : vector<4x1x1xf32> to vector<4x4x128xf32>
    %9 = arith.subf %7, %8 : vector<4x4x128xf32>
    %10 = arith.mulf %9, %9 : vector<4x4x128xf32>
    %cst_7 = arith.constant dense<0.000000e+00> : vector<4x4xf32>
    %11 = vector.multi_reduction <add>, %10, %cst_7 [2] : vector<4x4x128xf32> to vector<4x4xf32>
    %12 = vector.shape_cast %11 : vector<4x4xf32> to vector<4x4x1xf32>
    %cst_8 = arith.constant dense<0.000000e+00> : vector<4x1xf32>
    %13 = vector.multi_reduction <add>, %12, %cst_8 [1] : vector<4x4x1xf32> to vector<4x1xf32>
    %14 = vector.shape_cast %13 : vector<4x1xf32> to vector<4x1x1xf32>
    %cst_9 = arith.constant 0.001953125 : f32
    %15 = vector.broadcast %cst_9 : f32 to vector<4x1x1xf32>
    %16 = arith.mulf %14, %15 : vector<4x1x1xf32>
    %cst_10 = arith.constant 0.000000e+00 : f32
    %17 = vector.broadcast %cst_10 : f32 to vector<4x1x1xf32>
    %18 = arith.maximumf %16, %17 : vector<4x1x1xf32>
    %cst_11 = arith.constant 9.99999974E-6 : f32
    %19 = vector.broadcast %cst_11 : f32 to vector<4x1x1xf32>
    %20 = arith.addf %18, %19 : vector<4x1x1xf32>
    %21 = math.rsqrt %20 : vector<4x1x1xf32>
    %c0_12 = arith.constant 0 : index
    %c0_13 = arith.constant 0 : index
    %c0_14 = arith.constant 0 : index
    %22 = vector.load %arg2[%c0_12, %c0_13, %c0_14] : memref<4x4x1xf32, #tpu.memory_space<vmem>>, vector<4x4x1xf32>
    %23 = vector.broadcast %21 : vector<4x1x1xf32> to vector<4x4x1xf32>
    %24 = arith.mulf %22, %23 : vector<4x4x1xf32>
    %c0_15 = arith.constant 0 : index
    %c0_16 = arith.constant 0 : index
    %c0_17 = arith.constant 0 : index
    %25 = vector.load %arg3[%c0_15, %c0_16, %c0_17] : memref<4x4x1xf32, #tpu.memory_space<vmem>>, vector<4x4x1xf32>
    %26 = vector.broadcast %6 : vector<4x1x1xf32> to vector<4x4x1xf32>
    %27 = arith.mulf %26, %24 : vector<4x4x1xf32>
    %28 = arith.subf %25, %27 : vector<4x4x1xf32>
    %c0_18 = arith.constant 0 : index
    %c0_19 = arith.constant 0 : index
    %c0_20 = arith.constant 0 : index
    %29 = vector.load %arg1[%c0_18, %c0_19, %c0_20] : memref<4x4x128xf32, #tpu.memory_space<vmem>>, vector<4x4x128xf32>
    %30 = vector.broadcast %24 : vector<4x4x1xf32> to vector<4x4x128xf32>
    %31 = arith.mulf %29, %30 : vector<4x4x128xf32>
    %32 = vector.broadcast %28 : vector<4x4x1xf32> to vector<4x4x128xf32>
    %33 = arith.addf %31, %32 : vector<4x4x128xf32>
    %c0_21 = arith.constant 0 : index
    %c0_22 = arith.constant 0 : index
    %c0_23 = arith.constant 0 : index
    %34 = vector.load %arg4[%c0_21, %c0_22, %c0_23] : memref<4x4x128xf32, #tpu.memory_space<vmem>>, vector<4x4x128xf32>
    tpu.vector_store %arg4[%c0_21, %c0_22, %c0_23], %33 {strides = array<i32>} : memref<4x4x128xf32, #tpu.memory_space<vmem>>, vector<4x4x128xf32>,
    return
  }
  func.func @transform_0(%arg0: i32) -> (i32, i32, i32) {
    %c0_i32 = arith.constant 0 : i32
    %c0_i32_0 = arith.constant 0 : i32
    %c0_i32_1 = arith.constant 0 : i32
    return %arg0, %c0_i32, %c0_i32_0 : i32, i32, i32
  }
  func.func @transform_1(%arg0: i32) -> (i32, i32, i32) {
    %c0_i32 = arith.constant 0 : i32
    %c0_i32_0 = arith.constant 0 : i32
    %c0_i32_1 = arith.constant 0 : i32
    return %arg0, %c0_i32, %c0_i32_0 : i32, i32, i32
  }
  func.func @transform_2(%arg0: i32) -> (i32, i32, i32) {
    %c0_i32 = arith.constant 0 : i32
    %c0_i32_0 = arith.constant 0 : i32
    %c0_i32_1 = arith.constant 0 : i32
    return %arg0, %c0_i32, %c0_i32_0 : i32, i32, i32
  }
  func.func @transform_3(%arg0: i32) -> (i32, i32, i32) {
    %c0_i32 = arith.constant 0 : i32
    %c0_i32_0 = arith.constant 0 : i32
    %c0_i32_1 = arith.constant 0 : i32
    return %arg0, %c0_i32, %c0_i32_0 : i32, i32, i32
  }
}

</mosaic_0001>

<llo_original>
// kernel: tpu_custom_call.1
$region0: #{tpu_custom_call.1}
  #allocation0 [shape = 'u32[]', space=smem, size = 0x4, offset = 0x4, fixed_abs, tag = 'smem constant byte address 0x4 - core index']
  #allocation1 [shape = 'u32[144,128]{1,0:T(1,128)}', space=vmem, size = 0x12000, scoped, tag = 'internal scratch']
  %s0 = inlined_call_operand.vmem [shape: f32[4,4,128], index: 0, kind: input, shape index: {}]
  %s1 = inlined_call_operand.vmem [shape: f32[4,4,1], index: 1, kind: input, shape index: {}]
  %s2 = inlined_call_operand.vmem [shape: f32[4,4,1], index: 2, kind: input, shape index: {}]
  %s3 = inlined_call_operand.hbm [shape: f32[4,4,128], index: 3, kind: output, shape index: {}]
  %s4 = sld [smem:[#allocation0]]
  $region22: #{tpu_custom_call.1} parent=0
    _
  %s6 = ssub.s32 1, %s4
  %s7 = scalar_select 0, %s6, %s4
  $region1: #{tpu_custom_call.1} parent=0
    #allocation2 [shape = 'u8[8192]{0}', space=vmem, size = 0x2000, scoped, tag = 'output window, operand 0, single buffered']
    #allocation3 [shape = 's32[1]{0}', space=sflag, size = 0x4, scoped, tag = 'scoped memory for tpu_custom_call.1']
    %8 = vsyncpa [#allocation3], 0
    // Predicated region
    $region2: #{tpu_custom_call.1} parent=1 // pred_check
      _
    $region3: #{tpu_custom_call.1} parent=1 // pred_check_branch
      %10 = sbr.rel (0) target = $region5
    $region4: #{tpu_custom_call.1} parent=1 // pred_region
      _
    $region5: #{tpu_custom_call.1} parent=1 // pred_fallthru
      _
    // Predicated region
    $region6: #{tpu_custom_call.1} parent=1 // pred_check
      _
    $region7: #{tpu_custom_call.1} parent=1 // pred_check_branch
      %12 = sbr.rel (0) target = $region9
    $region8: #{tpu_custom_call.1} parent=1 // pred_region
      _
    $region9: #{tpu_custom_call.1} parent=1 // pred_fallthru
      _
    // Predicated region
    $region10: #{tpu_custom_call.1} parent=1 // pred_check
      _
    $region11: #{tpu_custom_call.1} parent=1 // pred_check_branch
      %14 = sbr.rel (0) target = $region13
    $region12: #{tpu_custom_call.1} parent=1 // pred_region
      _
    $region13: #{tpu_custom_call.1} parent=1 // pred_fallthru
      _
    %v15 = vld [vmem:[%s0] sm:$0xf]
    %v16 = vld [vmem:[%s0 + $0x4] sm:$0xf]
    %v17 = vld [vmem:[%s0 + $0x8] sm:$0xf]
    %v18 = vld [vmem:[%s0 + $0xc] sm:$0xf]
    %vm19 = vcmask 1043456
    %v20 = vsel %vm19, %v15, 0.0
    %21 = vadd.xlane.f32.xlu0 %v20
    %v22 = vpop.xlane.xlu0 %21
    %v23 = vsel %vm19, %v16, 0.0
    %24 = vadd.xlane.f32.xlu0 %v23
    %v25 = vpop.xlane.xlu0 %24
    %v26 = vsel %vm19, %v17, 0.0
    %27 = vadd.xlane.f32.xlu0 %v26
    %v28 = vpop.xlane.xlu0 %27
    %v29 = vsel %vm19, %v18, 0.0
    %30 = vadd.xlane.f32.xlu0 %v29
    %v31 = vpop.xlane.xlu0 %30
    %v32 = vsel %vm19, %v22, 0.0
    %v33 = vrot.slane %v32, 4
    %v34 = vadd.f32 %v32, %v33
    %v35 = vrot.slane %v34, 2
    %v36 = vadd.f32 %v34, %v35
    %v37 = vrot.slane %v36, 1
    %v38 = vadd.f32 %v36, %v37
    %v39 = vsel %vm19, %v25, 0.0
    %v40 = vrot.slane %v39, 4
    %v41 = vadd.f32 %v39, %v40
    %v42 = vrot.slane %v41, 2
    %v43 = vadd.f32 %v41, %v42
    %v44 = vrot.slane %v43, 1
    %v45 = vadd.f32 %v43, %v44
    %v46 = vsel %vm19, %v28, 0.0
    %v47 = vrot.slane %v46, 4
    %v48 = vadd.f32 %v46, %v47
    %v49 = vrot.slane %v48, 2
    %v50 = vadd.f32 %v48, %v49
    %v51 = vrot.slane %v50, 1
    %v52 = vadd.f32 %v50, %v51
    %v53 = vsel %vm19, %v31, 0.0
    %v54 = vrot.slane %v53, 4
    %v55 = vadd.f32 %v53, %v54
    %v56 = vrot.slane %v55, 2
    %v57 = vadd.f32 %v55, %v56
    %v58 = vrot.slane %v57, 1
    %v59 = vadd.f32 %v57, %v58
    %v60 = vmul.f32 %v38, 0.001953125
    %v61 = vmul.f32 %v45, 0.001953125
    %v62 = vmul.f32 %v52, 0.001953125
    %v63 = vmul.f32 %v59, 0.001953125
    %v64 = vsub.f32 %v15, %v60
    %v65 = vsub.f32 %v16, %v61
    %v66 = vsub.f32 %v17, %v62
    %v67 = vsub.f32 %v18, %v63
    %v68 = vmul.f32 %v64, %v64
    %v69 = vmul.f32 %v65, %v65
    %v70 = vmul.f32 %v66, %v66
    %v71 = vmul.f32 %v67, %v67
    %v72 = vsel %vm19, %v68, 0.0
    %73 = vadd.xlane.f32.xlu0 %v72
    %v74 = vpop.xlane.xlu0 %73
    %v75 = vsel %vm19, %v69, 0.0
    %76 = vadd.xlane.f32.xlu0 %v75
    %v77 = vpop.xlane.xlu0 %76
    %v78 = vsel %vm19, %v70, 0.0
    %79 = vadd.xlane.f32.xlu0 %v78
    %v80 = vpop.xlane.xlu0 %79
    %v81 = vsel %vm19, %v71, 0.0
    %82 = vadd.xlane.f32.xlu0 %v81
    %v83 = vpop.xlane.xlu0 %82
    %v84 = vsel %vm19, %v74, 0.0
    %v85 = vrot.slane %v84, 4
    %v86 = vadd.f32 %v84, %v85
    %v87 = vrot.slane %v86, 2
    %v88 = vadd.f32 %v86, %v87
    %v89 = vrot.slane %v88, 1
    %v90 = vadd.f32 %v88, %v89
    %v91 = vsel %vm19, %v77, 0.0
    %v92 = vrot.slane %v91, 4
    %v93 = vadd.f32 %v91, %v92
    %v94 = vrot.slane %v93, 2
    %v95 = vadd.f32 %v93, %v94
    %v96 = vrot.slane %v95, 1
    %v97 = vadd.f32 %v95, %v96
    %v98 = vsel %vm19, %v80, 0.0
    %v99 = vrot.slane %v98, 4
    %v100 = vadd.f32 %v98, %v99
    %v101 = vrot.slane %v100, 2
    %v102 = vadd.f32 %v100, %v101
    %v103 = vrot.slane %v102, 1
    %v104 = vadd.f32 %v102, %v103
    %v105 = vsel %vm19, %v83, 0.0
    %v106 = vrot.slane %v105, 4
    %v107 = vadd.f32 %v105, %v106
    %v108 = vrot.slane %v107, 2
    %v109 = vadd.f32 %v107, %v108
    %v110 = vrot.slane %v109, 1
    %v111 = vadd.f32 %v109, %v110
    %v112 = vmul.f32 %v90, 0.001953125
    %v113 = vmul.f32 %v97, 0.001953125
    %v114 = vmul.f32 %v104, 0.001953125
    %v115 = vmul.f32 %v111, 0.001953125
    %v116 = vmax.f32 %v112, 0.0
    %v117 = vmax.f32 %v113, 0.0
    %v118 = vmax.f32 %v114, 0.0
    %v119 = vmax.f32 %v115, 0.0
    %v120 = vadd.f32 %v116, 1e-05
    %v121 = vadd.f32 %v117, 1e-05
    %v122 = vadd.f32 %v118, 1e-05
    %v123 = vadd.f32 %v119, 1e-05
    %v124 = vrsqrt.pop %v120
    %v125 = vrsqrt.pop %v121
    %v126 = vrsqrt.pop %v122
    %v127 = vrsqrt.pop %v123
    %v128 = vld [vmem:[%s1] sm:$0xf]
    %v129 = vld [vmem:[%s1 + $0x4] sm:$0xf]
    %v130 = vld [vmem:[%s1 + $0x8] sm:$0xf]
    %v131 = vld [vmem:[%s1 + $0xc] sm:$0xf]
    %v132 = vmul.f32 %v128, %v124
    %v133 = vmul.f32 %v129, %v125
    %v134 = vmul.f32 %v130, %v126
    %v135 = vmul.f32 %v131, %v127
    %v136 = vld [vmem:[%s2] sm:$0xf]
    %v137 = vld [vmem:[%s2 + $0x4] sm:$0xf]
    %v138 = vld [vmem:[%s2 + $0x8] sm:$0xf]
    %v139 = vld [vmem:[%s2 + $0xc] sm:$0xf]
    %v140 = vmul.f32 %v60, %v132
    %v141 = vmul.f32 %v61, %v133
    %v142 = vmul.f32 %v62, %v134
    %v143 = vmul.f32 %v63, %v135
    %v144 = vsub.f32 %v136, %v140
    %v145 = vsub.f32 %v137, %v141
    %v146 = vsub.f32 %v138, %v142
    %v147 = vsub.f32 %v139, %v143
    %149 = vset.pattern.permute.xlu0 0
    %150 = vperm.xlu0 %149, %v132
    %v151 = vpop.permute.xlu0 %150
    %154 = vset.pattern.permute.xlu0 0
    %155 = vperm.xlu0 %154, %v133
    %v156 = vpop.permute.xlu0 %155
    %159 = vset.pattern.permute.xlu0 0
    %160 = vperm.xlu0 %159, %v134
    %v161 = vpop.permute.xlu0 %160
    %164 = vset.pattern.permute.xlu0 0
    %165 = vperm.xlu0 %164, %v135
    %v166 = vpop.permute.xlu0 %165
    %v168 = vmul.f32 %v15, %v151
    %v169 = vmul.f32 %v16, %v156
    %v170 = vmul.f32 %v17, %v161
    %v171 = vmul.f32 %v18, %v166
    %173 = vset.pattern.permute.xlu0 0
    %174 = vperm.xlu0 %173, %v144
    %v175 = vpop.permute.xlu0 %174
    %178 = vset.pattern.permute.xlu0 0
    %179 = vperm.xlu0 %178, %v145
    %v180 = vpop.permute.xlu0 %179
    %183 = vset.pattern.permute.xlu0 0
    %184 = vperm.xlu0 %183, %v146
    %v185 = vpop.permute.xlu0 %184
    %188 = vset.pattern.permute.xlu0 0
    %189 = vperm.xlu0 %188, %v147
    %v190 = vpop.permute.xlu0 %189
    %v192 = vadd.f32 %v168, %v175
    %v193 = vadd.f32 %v169, %v180
    %v194 = vadd.f32 %v170, %v185
    %v195 = vadd.f32 %v171, %v190
    %196 = vst [vmem:[#allocation2] sm:$0xf] %v192
    %197 = vst [vmem:[#allocation2 + $0x4] sm:$0xf] %v193
    %198 = vst [vmem:[#allocation2 + $0x8] sm:$0xf] %v194
    %199 = vst [vmem:[#allocation2 + $0xc] sm:$0xf] %v195
    // Predicated region
    $region14: #{tpu_custom_call.1} parent=1 // pred_check
      _
    $region15: #{tpu_custom_call.1} parent=1 // pred_check_branch
      %201 = sbr.rel (0) target = $region17
    $region16: #{tpu_custom_call.1} parent=1 // pred_region
      %s203 = ssub.s32 256, 256
      %204 = vsyncadd [#allocation3], %s203
      %s205 = sshll.u32 [#allocation2], 4
      %s206 = int_to_ptr.vmem [resolvable:$true] %s205
      %211 = dma.vmem_to_hbm [thread:$0]  %s206, 256, %s3, [#allocation3], 64, 64, 4
    $region17: #{tpu_custom_call.1} parent=1 // pred_fallthru
      _
    // Predicated region
    $region18: #{tpu_custom_call.1} parent=1 // pred_check
      _
    $region19: #{tpu_custom_call.1} parent=1 // pred_check_branch
      %213 = sbr.rel (0) target = $region21
    $region20: #{tpu_custom_call.1} parent=1 // pred_region
      %214 = dma.done [#allocation3], 256
    $region21: #{tpu_custom_call.1} parent=1 // pred_fallthru
      _
    %215 = vsyncpa [#allocation3], 1

</llo_original>
